<compile_context>
chip_gen: v7x
topology: tpu7x:2x2x1
jax: 0.10.0
libtpu: 0.0.40
codegen_flags: <defaults>
</compile_context>

<pallas_src>
import functools
import math

import jax
import jax.numpy as jnp
from jax.experimental import pallas as pl
from jax.experimental.pallas import tpu as pltpu


def _round_up(x: int, m: int) -> int:
    return (x + m - 1) // m * m


def gcn_layer_kernel(a_ref, hsrc_ref, hres_ref, w_ref, wres_ref, b_ref,
                     o_ref, acc_ref, *, fin):
    # grid = (row tiles, contraction tiles); reduction axis k is LAST.
    k = pl.program_id(1)

    @pl.when(k == 0)
    def _init():
        acc_ref[...] = jnp.zeros_like(acc_ref)

    # acc += A_tile @ [D_out^{-1/2} H | 1]_tile
    # bf16 x bf16 on the MXU, f32 accumulation; column `fin` of acc ends up
    # holding the in-degree of each destination row (exactly, since 0/1
    # products are exact and the accumulate is f32).
    acc_ref[...] += jnp.dot(a_ref[...], hsrc_ref[...],
                            preferred_element_type=jnp.float32)

    @pl.when(k == pl.num_programs(1) - 1)
    def _finalize():
        acc = acc_ref[...]                               # [tm, fin+1] f32
        deg = jnp.maximum(acc[:, fin:], 1.0)             # in-degree, clamped
        agg = jax.lax.rsqrt(deg) * acc[:, :fin]          # D_in^{-1/2} scale
        # Two small f32 feature matmuls (epilogue, once per row tile):
        #   agg @ W  +  H @ W_res  + (b + b_res)
        gh = (jnp.dot(agg, w_ref[...], preferred_element_type=jnp.float32)
              + jnp.dot(hres_ref[...], wres_ref[...],
                        preferred_element_type=jnp.float32)
              + b_ref[...])
        o_ref[...] = jnp.maximum(gh, 0.0)                # ReLU, lane-dense vst


def gcn_layer(a, h, w, b, w_res, b_res, *, tm=512, tk=2048):
    """GraphConv('both') + residual Linear + ReLU.

    a:           [N, N]  dense 0/1 adjacency, a[i, j] = 1. for edge j -> i
    h:           [N, Fin] node features
    w, b:        GraphConv weight [Fin, Hid] / bias [Hid]
    w_res,b_res: residual Linear weight [Fin, Hid] / bias [Hid]
    tm, tk:      row / contraction tile sizes (multiples of 128). Defaults
                 sized for the HBM-bound regime; they are clamped to the
                 (128-rounded) graph size for small graphs.
    """
    n = a.shape[0]
    fin = h.shape[1]
    hid = w.shape[1]
    hp = _round_up(hid, 128)            # lane-dense output width

    n128 = _round_up(n, 128)
    tm = max(128, min(tm, n128))
    tk = max(128, min(tk, n128))
    npad = _round_up(n128, math.lcm(tm, tk))

    # ---- per-source normalization: ONE pass over A in the wrapper ----------
    out_deg = jnp.maximum(jnp.sum(a.astype(jnp.float32), axis=0), 1.0)  # [N]
    osd = jax.lax.rsqrt(out_deg)                      # D_out^{-1/2}

    h32 = h.astype(jnp.float32)

    # Source features pre-scaled by D_out^{-1/2}, plus a ones column so the
    # aggregation matmul also yields the in-degree. bf16 for the MXU stream.
    hsrc = jnp.zeros((npad, fin + 1), jnp.float32)
    hsrc = hsrc.at[:n, :fin].set(h32 * osd[:, None])
    hsrc = hsrc.at[:n, fin].set(1.0)
    hsrc = hsrc.astype(jnp.bfloat16)

    # Residual-branch features stay f32 (tiny stream, exact epilogue matmul).
    hres = jnp.zeros((npad, fin), jnp.float32).at[:n, :].set(h32)

    # A streams as bf16 (0/1 exact); only copy/pad when the shape requires it.
    if npad == n:
        a_bf = a.astype(jnp.bfloat16)
    else:
        a_bf = jnp.zeros((npad, npad), jnp.bfloat16).at[:n, :n].set(
            a.astype(jnp.bfloat16))

    w_p = jnp.zeros((fin, hp), jnp.float32).at[:, :hid].set(
        w.astype(jnp.float32))
    wres_p = jnp.zeros((fin, hp), jnp.float32).at[:, :hid].set(
        w_res.astype(jnp.float32))
    b_cat = jnp.zeros((1, hp), jnp.float32).at[0, :hid].set(
        b.astype(jnp.float32) + b_res.astype(jnp.float32))

    grid = (npad // tm, npad // tk)

    out = pl.pallas_call(
        functools.partial(gcn_layer_kernel, fin=fin),
        out_shape=jax.ShapeDtypeStruct((npad, hp), jnp.float32),
        grid=grid,
        in_specs=[
            pl.BlockSpec((tm, tk), lambda i, k: (i, k)),        # A (bf16)
            pl.BlockSpec((tk, fin + 1), lambda i, k: (k, 0)),   # [H*osd | 1]
            pl.BlockSpec((tm, fin), lambda i, k: (i, 0)),       # H (residual)
            pl.BlockSpec((fin, hp), lambda i, k: (0, 0)),       # W
            pl.BlockSpec((fin, hp), lambda i, k: (0, 0)),       # W_res
            pl.BlockSpec((1, hp), lambda i, k: (0, 0)),         # b + b_res
        ],
        out_specs=pl.BlockSpec((tm, hp), lambda i, k: (i, 0)),
        scratch_shapes=[pltpu.VMEM((tm, fin + 1), jnp.float32)],
        compiler_params=pltpu.CompilerParams(
            dimension_semantics=("parallel", "arbitrary"),
            vmem_limit_bytes=32 * 1024 * 1024),
    )(a_bf, hsrc, hres, w_p, wres_p, b_cat)

    return out[:n, :hid]


if __name__ == "__main__":
    key = jax.random.PRNGKey(0)
    k_a, k_h, k_w, k_b, k_wr, k_br = jax.random.split(key, 6)

    N = 256          # graph nodes
    IN_SIZE = 48     # in_size
    HIDDEN = 32      # hidden_size (!= in_size -> residual uses a Linear)

    # Dense random 0/1 adjacency (edge j -> i stored at a[i, j]).
    a = (jax.random.uniform(k_a, (N, N)) < 0.1).astype(jnp.float32)
    h = jax.random.normal(k_h, (N, IN_SIZE), dtype=jnp.float32)

    # Deterministic parameter init (synthetic; no checkpoint load).
    w = 0.1 * jax.random.normal(k_w, (IN_SIZE, HIDDEN), dtype=jnp.float32)
    b = 0.1 * jax.random.normal(k_b, (HIDDEN,), dtype=jnp.float32)
    w_res = 0.1 * jax.random.normal(k_wr, (IN_SIZE, HIDDEN), dtype=jnp.float32)
    b_res = 0.1 * jax.random.normal(k_br, (HIDDEN,), dtype=jnp.float32)

    # Small tiles here so the 256-node demo exercises a 2x2 grid (accumulator
    # init/finalize across the reduction axis); production defaults are large.
    out = gcn_layer(a, h, w, b, w_res, b_res, tm=128, tk=128)
    jax.block_until_ready(out)

    # Pure-JAX reference (same math as the PyTorch module).
    in_deg = jnp.maximum(a.sum(axis=1, keepdims=True), 1.0)
    out_deg = jnp.maximum(a.sum(axis=0, keepdims=True), 1.0)
    a_hat = a / jnp.sqrt(in_deg) / jnp.sqrt(out_deg)
    ref = jnp.maximum((a_hat @ h) @ w + b + (h @ w_res + b_res), 0.0)
    assert out.shape == ref.shape
    err = float(jnp.max(jnp.abs(out - ref)))
    # bf16 source-feature stream adds ~1e-3 relative error vs the f32 ref.
    assert jnp.allclose(out, ref, atol=1e-2, rtol=1e-2), err

    print("KERNEL_OK")
</pallas_src>

<mosaic_0001>
module attributes {stable_mosaic.version = 11 : i64} {
  func.func @gcn_layer_kernel(%arg0: i32, %arg1: i32, %arg2: memref<128x128xbf16, #tpu.memory_space<vmem>>, %arg3: memref<128x49xbf16, #tpu.memory_space<vmem>>, %arg4: memref<128x48xf32, #tpu.memory_space<vmem>>, %arg5: memref<48x128xf32, #tpu.memory_space<vmem>>, %arg6: memref<48x128xf32, #tpu.memory_space<vmem>>, %arg7: memref<1x128xf32, #tpu.memory_space<vmem>>, %arg8: memref<128x128xf32, #tpu.memory_space<vmem>>, %arg9: memref<128x49xf32, #tpu.memory_space<vmem>>) attributes {dimension_semantics = [#tpu.dimension_semantics<parallel>, #tpu.dimension_semantics<arbitrary>], iteration_bounds = array<i64: 2, 2>, scalar_prefetch = 0 : i64, scratch_operands = 1 : i64, tpu.core_type = #tpu.core_type<tc>, window_params = [{transform_indices = @transform_0, window_bounds = array<i64: 128, 128>}, {transform_indices = @transform_1, window_bounds = array<i64: 128, 49>}, {transform_indices = @transform_2, window_bounds = array<i64: 128, 48>}, {pipeline_mode = #tpu.pipeline_mode<synchronous>, transform_indices = @transform_3, window_bounds = array<i64: 48, 128>}, {pipeline_mode = #tpu.pipeline_mode<synchronous>, transform_indices = @transform_4, window_bounds = array<i64: 48, 128>}, {pipeline_mode = #tpu.pipeline_mode<synchronous>, transform_indices = @transform_5, window_bounds = array<i64: 1, 128>}, {transform_indices = @transform_6, window_bounds = array<i64: 128, 128>}]} {
    %c0_i32 = arith.constant 0 : i32
    %0 = arith.cmpi eq, %arg1, %c0_i32 : i32
    %1 = arith.extui %0 : i1 to i32
    %c0_i32_0 = arith.constant 0 : i32
    %2 = arith.cmpi ne, %1, %c0_i32_0 : i32
    scf.if %2 {
      %cst_9 = arith.constant 0.000000e+00 : f32
      %12 = vector.broadcast %cst_9 : f32 to vector<128x49xf32>
      %c0_10 = arith.constant 0 : index
      %c0_11 = arith.constant 0 : index
      %13 = vector.load %arg9[%c0_10, %c0_11] : memref<128x49xf32, #tpu.memory_space<vmem>>, vector<128x49xf32>
      tpu.vector_store %arg9[%c0_10, %c0_11], %12 {strides = array<i32>} : memref<128x49xf32, #tpu.memory_space<vmem>>, vector<128x49xf32>,
    } else {
    }
    %c0 = arith.constant 0 : index
    %c0_1 = arith.constant 0 : index
    %3 = vector.load %arg9[%c0, %c0_1] : memref<128x49xf32, #tpu.memory_space<vmem>>, vector<128x49xf32>
    %c0_2 = arith.constant 0 : index
    %c0_3 = arith.constant 0 : index
    %4 = vector.load %arg2[%c0_2, %c0_3] : memref<128x128xbf16, #tpu.memory_space<vmem>>, vector<128x128xbf16>
    %c0_4 = arith.constant 0 : index
    %c0_5 = arith.constant 0 : index
    %5 = vector.load %arg3[%c0_4, %c0_5] : memref<128x49xbf16, #tpu.memory_space<vmem>>, vector<128x49xbf16>
    %cst = arith.constant dense<0.000000e+00> : vector<128x49xf32>
    %6 = tpu.matmul %4, %5, %cst {dimension_numbers = #tpu.dot_dimension_numbers<[1], [0], [0], [1], [0, 0, 1, 1], [], []>} : vector<128x128xbf16>, vector<128x49xbf16>, vector<128x49xf32> -> vector<128x49xf32>
    %7 = arith.addf %3, %6 : vector<128x49xf32>
    %c0_6 = arith.constant 0 : index
    %c0_7 = arith.constant 0 : index
    %8 = vector.load %arg9[%c0_6, %c0_7] : memref<128x49xf32, #tpu.memory_space<vmem>>, vector<128x49xf32>
    tpu.vector_store %arg9[%c0_6, %c0_7], %7 {strides = array<i32>} : memref<128x49xf32, #tpu.memory_space<vmem>>, vector<128x49xf32>,
    %c1_i32 = arith.constant 1 : i32
    %9 = arith.cmpi eq, %arg1, %c1_i32 : i32
    %10 = arith.extui %9 : i1 to i32
    %c0_i32_8 = arith.constant 0 : i32
    %11 = arith.cmpi ne, %10, %c0_i32_8 : i32
    scf.if %11 {
      %c0_9 = arith.constant 0 : index
      %c0_10 = arith.constant 0 : index
      %12 = vector.load %arg9[%c0_9, %c0_10] : memref<128x49xf32, #tpu.memory_space<vmem>>, vector<128x49xf32>
      %13 = vector.extract_strided_slice %12 {offsets = [0, 48], sizes = [128, 1], strides = [1, 1]} : vector<128x49xf32> to vector<128x1xf32>
      %cst_11 = arith.constant 1.000000e+00 : f32
      %14 = vector.broadcast %cst_11 : f32 to vector<128x1xf32>
      %15 = arith.maximumf %13, %14 : vector<128x1xf32>
      %16 = math.rsqrt %15 : vector<128x1xf32>
      %17 = vector.extract_strided_slice %12 {offsets = [0, 0], sizes = [128, 48], strides = [1, 1]} : vector<128x49xf32> to vector<128x48xf32>
      %18 = vector.broadcast %16 : vector<128x1xf32> to vector<128x48xf32>
      %19 = arith.mulf %18, %17 : vector<128x48xf32>
      %c0_12 = arith.constant 0 : index
      %c0_13 = arith.constant 0 : index
      %20 = vector.load %arg5[%c0_12, %c0_13] : memref<48x128xf32, #tpu.memory_space<vmem>>, vector<48x128xf32>
      %cst_14 = arith.constant dense<0.000000e+00> : vector<128x128xf32>
      %21 = tpu.matmul %19, %20, %cst_14 {dimension_numbers = #tpu.dot_dimension_numbers<[1], [0], [0], [1], [0, 0, 1, 1], [], []>} : vector<128x48xf32>, vector<48x128xf32>, vector<128x128xf32> -> vector<128x128xf32>
      %c0_15 = arith.constant 0 : index
      %c0_16 = arith.constant 0 : index
      %22 = vector.load %arg4[%c0_15, %c0_16] : memref<128x48xf32, #tpu.memory_space<vmem>>, vector<128x48xf32>
      %c0_17 = arith.constant 0 : index
      %c0_18 = arith.constant 0 : index
      %23 = vector.load %arg6[%c0_17, %c0_18] : memref<48x128xf32, #tpu.memory_space<vmem>>, vector<48x128xf32>
      %cst_19 = arith.constant dense<0.000000e+00> : vector<128x128xf32>
      %24 = tpu.matmul %22, %23, %cst_19 {dimension_numbers = #tpu.dot_dimension_numbers<[1], [0], [0], [1], [0, 0, 1, 1], [], []>} : vector<128x48xf32>, vector<48x128xf32>, vector<128x128xf32> -> vector<128x128xf32>
      %25 = arith.addf %21, %24 : vector<128x128xf32>
      %c0_20 = arith.constant 0 : index
      %c0_21 = arith.constant 0 : index
      %26 = vector.load %arg7[%c0_20, %c0_21] : memref<1x128xf32, #tpu.memory_space<vmem>>, vector<1x128xf32>
      %27 = vector.broadcast %26 : vector<1x128xf32> to vector<128x128xf32>
      %28 = arith.addf %25, %27 : vector<128x128xf32>
      %cst_22 = arith.constant 0.000000e+00 : f32
      %29 = vector.broadcast %cst_22 : f32 to vector<128x128xf32>
      %30 = arith.maximumf %28, %29 : vector<128x128xf32>
      %c0_23 = arith.constant 0 : index
      %c0_24 = arith.constant 0 : index
      %31 = vector.load %arg8[%c0_23, %c0_24] : memref<128x128xf32, #tpu.memory_space<vmem>>, vector<128x128xf32>
      tpu.vector_store %arg8[%c0_23, %c0_24], %30 {strides = array<i32>} : memref<128x128xf32, #tpu.memory_space<vmem>>, vector<128x128xf32>,
    } else {
    }
    return
  }
  func.func @transform_0(%arg0: i32, %arg1: i32) -> (i32, i32) {
    %c0_i32 = arith.constant 0 : i32
    return %arg0, %arg1 : i32, i32
  }
  func.func @transform_1(%arg0: i32, %arg1: i32) -> (i32, i32) {
    %c0_i32 = arith.constant 0 : i32
    %c0_i32_0 = arith.constant 0 : i32
    return %arg1, %c0_i32 : i32, i32
  }
  func.func @transform_2(%arg0: i32, %arg1: i32) -> (i32, i32) {
    %c0_i32 = arith.constant 0 : i32
    %c0_i32_0 = arith.constant 0 : i32
    return %arg0, %c0_i32 : i32, i32
  }
  func.func @transform_3(%arg0: i32, %arg1: i32) -> (i32, i32) {
    %c0_i32 = arith.constant 0 : i32
    %c0_i32_0 = arith.constant 0 : i32
    %c0_i32_1 = arith.constant 0 : i32
    return %c0_i32, %c0_i32_0 : i32, i32
  }
  func.func @transform_4(%arg0: i32, %arg1: i32) -> (i32, i32) {
    %c0_i32 = arith.constant 0 : i32
    %c0_i32_0 = arith.constant 0 : i32
    %c0_i32_1 = arith.constant 0 : i32
    return %c0_i32, %c0_i32_0 : i32, i32
  }
  func.func @transform_5(%arg0: i32, %arg1: i32) -> (i32, i32) {
    %c0_i32 = arith.constant 0 : i32
    %c0_i32_0 = arith.constant 0 : i32
    %c0_i32_1 = arith.constant 0 : i32
    return %c0_i32, %c0_i32_0 : i32, i32
  }
  func.func @transform_6(%arg0: i32, %arg1: i32) -> (i32, i32) {
    %c0_i32 = arith.constant 0 : i32
    %c0_i32_0 = arith.constant 0 : i32
    return %arg0, %c0_i32 : i32, i32
  }
}

</mosaic_0001>

<llo_original>
// kernel: tpu_custom_call.1
$region0: #{tpu_custom_call.1}
  #allocation0 [shape = 'u32[]', space=smem, size = 0x4, offset = 0x4, fixed_abs, tag = 'smem constant byte address 0x4 - core index']
  #allocation1 [shape = 'u32[144,128]{1,0:T(1,128)}', space=vmem, size = 0x12000, scoped, tag = 'internal scratch']
  #allocation2 [shape = 'f32[128,49]{1,0:T(8,128)}', space=vmem, size = 0x10000, scoped, tag = 'scratch operand']
  %s0 = inlined_call_operand.vmem [shape: bf16[256,256], index: 0, kind: input, shape index: {}]
  %s1 = inlined_call_operand.vmem [shape: bf16[256,49], index: 1, kind: input, shape index: {}]
  %s2 = inlined_call_operand.vmem [shape: f32[256,48], index: 2, kind: input, shape index: {}]
  %s3 = inlined_call_operand.vmem [shape: f32[48,128], index: 3, kind: input, shape index: {}]
  %s4 = inlined_call_operand.vmem [shape: f32[48,128], index: 4, kind: input, shape index: {}]
  %s5 = inlined_call_operand.vmem [shape: f32[1,128], index: 5, kind: input, shape index: {}]
  %s6 = inlined_call_operand.hbm [shape: f32[256,128], index: 6, kind: output, shape index: {}]
  %s7 = sld [smem:[#allocation0]]
  $region106: #{tpu_custom_call.1} parent=0
    _
  %s9 = ssub.s32 1, %s7
  %s10 = scalar_select 0, %s9, %s7
  $region1: #{tpu_custom_call.1} parent=0
    #allocation3 [shape = 'u8[65536]{0}', space=vmem, size = 0x10000, scoped, tag = 'input window, operand 0']
    #allocation4 [shape = 'u8[131072]{0}', space=vmem, size = 0x20000, scoped, tag = 'output window, operand 0']
    #allocation5 [shape = 's32[2]{0}', space=sflag, size = 0x8, scoped, tag = 'scoped memory for tpu_custom_call.1']
    %11 = vsyncpa [#allocation5], 0
    %s12 = scalar_lea.sflag [#allocation5], 1
    %13 = vsyncpa %s12, 0
    loop: start=0, step=1, limit=6
    $region2: #{tpu_custom_call.1} parent=1 // loop_pre_header
      _
    $region3: #{tpu_custom_call.1} parent=1 // loop_header
      %s15 = sphi 0, %s19
      %p16 = scmp.ge.s32.totalorder %s15, 6
      %s22 = sphi 0, %s34
      %s23 = sphi 0, %s30
      %s24 = sphi 0, %s22
      %s25 = sphi 0, %s23
      %s26 = sphi 0, %s24
      %s27 = sphi 0, %s25
      %s39 = sphi 0, %s41
      %s42 = sphi 0, %s39
      %s43 = sphi 0, %s42
      %s59 = sphi 0, %s43
      %s65 = sphi 0, %s67
      %s68 = sphi 0, %s65
      %s69 = sphi 0, %s68
      %s85 = sphi 0, %s69
      %s91 = sphi 0, %s93
      %s94 = sphi 0, %s91
      %s95 = sphi 0, %s94
      %s111 = sphi 0, %s95
      %s115 = sphi 0, %s115
      %s117 = sphi 0, %s115
      %s118 = sphi 0, %s117
      %s132 = sphi 0, %s118
      %s136 = sphi 0, %s136
      %s138 = sphi 0, %s136
      %s139 = sphi 0, %s138
      %s153 = sphi 0, %s139
      %s157 = sphi 0, %s157
      %s159 = sphi 0, %s157
      %s160 = sphi 0, %s159
      %s174 = sphi 0, %s160
      %s180 = sphi 0, %s182
      %s183 = sphi 0, %s180
      %s184 = sphi 0, %s183
      %s200 = sphi 0, %s184
    $region4: #{tpu_custom_call.1} parent=1 // loop_header_branch
      %18 = sbr.rel (%p16) target = $region8
    $region5: #{tpu_custom_call.1} parent=1 // loop_body
      %s20 = ssub.s32 %s15, 1
      %s21 = ssub.s32 %s15, 2
      %s28 = sadd.s32 1, %s23
      %p29 = scmp.ge.s32.totalorder %s28, 2
      %s30 = scalar_select %p29, 0, %s28
      %s31 = sadd.s32 1, %s22
      %s32 = scalar_select %p29, %s31, %s22
      %p33 = scmp.ge.s32.totalorder %s32, 2
      %s34 = scalar_select %p33, 0, %s32
      %s35 = ssub.s32 %s22, %s34
      %s36 = ssub.s32 %s23, %s30
      %s37 = sor.u32 %s35, %s36
      %p38 = scmp.eq.s32.totalorder %s37, 0
      %s40 = sadd.s32 %s39, 1
      %s41 = scalar_select %p38, %s39, %s40
      %p44 = pneg %p38
      %p45 = scmp.eq.s32.totalorder %s15, 3
      %p46 = por %p44, %p45
      %p47 = scmp.ne.s32.totalorder %s39, %s42
      %p48 = scmp.eq.s32.totalorder %s15, 0
      %p49 = por %p47, %p48
      %p50 = scmp.ne.s32.totalorder %s39, %s42
      %p51 = scmp.eq.s32.totalorder %s20, 3
      %p52 = por %p50, %p51
      %p53 = scmp.ne.s32.totalorder %s42, %s43
      %p54 = scmp.eq.s32.totalorder %s20, 0
      %p55 = por %p53, %p54
      %p56 = scmp.ne.s32.totalorder %s42, %s43
      %p57 = scmp.eq.s32.totalorder %s21, 3
      %p58 = por %p56, %p57
      %p60 = scmp.ne.s32.totalorder %s43, %s59
      %p61 = scmp.eq.s32.totalorder %s21, 0
      %p62 = por %p60, %p61
      %s63 = ssub.s32 %s23, %s30
      %p64 = scmp.eq.s32.totalorder %s63, 0
      %s66 = sadd.s32 %s65, 1
      %s67 = scalar_select %p64, %s65, %s66
      %p70 = pneg %p64
      %p71 = scmp.eq.s32.totalorder %s15, 3
      %p72 = por %p70, %p71
      %p73 = scmp.ne.s32.totalorder %s65, %s68
      %p74 = scmp.eq.s32.totalorder %s15, 0
      %p75 = por %p73, %p74
      %p76 = scmp.ne.s32.totalorder %s65, %s68
      %p77 = scmp.eq.s32.totalorder %s20, 3
      %p78 = por %p76, %p77
      %p79 = scmp.ne.s32.totalorder %s68, %s69
      %p80 = scmp.eq.s32.totalorder %s20, 0
      %p81 = por %p79, %p80
      %p82 = scmp.ne.s32.totalorder %s68, %s69
      %p83 = scmp.eq.s32.totalorder %s21, 3
      %p84 = por %p82, %p83
      %p86 = scmp.ne.s32.totalorder %s69, %s85
      %p87 = scmp.eq.s32.totalorder %s21, 0
      %p88 = por %p86, %p87
      %s89 = ssub.s32 %s22, %s34
      %p90 = scmp.eq.s32.totalorder %s89, 0
      %s92 = sadd.s32 %s91, 1
      %s93 = scalar_select %p90, %s91, %s92
      %p96 = pneg %p90
      %p97 = scmp.eq.s32.totalorder %s15, 3
      %p98 = por %p96, %p97
      %p99 = scmp.ne.s32.totalorder %s91, %s94
      %p100 = scmp.eq.s32.totalorder %s15, 0
      %p101 = por %p99, %p100
      %p102 = scmp.ne.s32.totalorder %s91, %s94
      %p103 = scmp.eq.s32.totalorder %s20, 3
      %p104 = por %p102, %p103
      %p105 = scmp.ne.s32.totalorder %s94, %s95
      %p106 = scmp.eq.s32.totalorder %s20, 0
      %p107 = por %p105, %p106
      %p108 = scmp.ne.s32.totalorder %s94, %s95
      %p109 = scmp.eq.s32.totalorder %s21, 3
      %p110 = por %p108, %p109
      %p112 = scmp.ne.s32.totalorder %s95, %s111
      %p113 = scmp.eq.s32.totalorder %s21, 0
      %p114 = por %p112, %p113
      %s116 = sadd.s32 %s115, 1
      %p119 = scmp.eq.s32.totalorder %s15, 3
      %p120 = scmp.ne.s32.totalorder %s115, %s117
      %p121 = scmp.eq.s32.totalorder %s15, 0
      %p122 = por %p120, %p121
      %p123 = scmp.ne.s32.totalorder %s115, %s117
      %p124 = scmp.eq.s32.totalorder %s20, 3
      %p125 = por %p123, %p124
      %p126 = scmp.ne.s32.totalorder %s117, %s118
      %p127 = scmp.eq.s32.totalorder %s20, 0
      %p128 = por %p126, %p127
      %p129 = scmp.ne.s32.totalorder %s117, %s118
      %p130 = scmp.eq.s32.totalorder %s21, 3
      %p131 = por %p129, %p130
      %p133 = scmp.ne.s32.totalorder %s118, %s132
      %p134 = scmp.eq.s32.totalorder %s21, 0
      %p135 = por %p133, %p134
      %s137 = sadd.s32 %s136, 1
      %p140 = scmp.eq.s32.totalorder %s15, 3
      %p141 = scmp.ne.s32.totalorder %s136, %s138
      %p142 = scmp.eq.s32.totalorder %s15, 0
      %p143 = por %p141, %p142
      %p144 = scmp.ne.s32.totalorder %s136, %s138
      %p145 = scmp.eq.s32.totalorder %s20, 3
      %p146 = por %p144, %p145
      %p147 = scmp.ne.s32.totalorder %s138, %s139
      %p148 = scmp.eq.s32.totalorder %s20, 0
      %p149 = por %p147, %p148
      %p150 = scmp.ne.s32.totalorder %s138, %s139
      %p151 = scmp.eq.s32.totalorder %s21, 3
      %p152 = por %p150, %p151
      %p154 = scmp.ne.s32.totalorder %s139, %s153
      %p155 = scmp.eq.s32.totalorder %s21, 0
      %p156 = por %p154, %p155
      %s158 = sadd.s32 %s157, 1
      %p161 = scmp.eq.s32.totalorder %s15, 3
      %p162 = scmp.ne.s32.totalorder %s157, %s159
      %p163 = scmp.eq.s32.totalorder %s15, 0
      %p164 = por %p162, %p163
      %p165 = scmp.ne.s32.totalorder %s157, %s159
      %p166 = scmp.eq.s32.totalorder %s20, 3
      %p167 = por %p165, %p166
      %p168 = scmp.ne.s32.totalorder %s159, %s160
      %p169 = scmp.eq.s32.totalorder %s20, 0
      %p170 = por %p168, %p169
      %p171 = scmp.ne.s32.totalorder %s159, %s160
      %p172 = scmp.eq.s32.totalorder %s21, 3
      %p173 = por %p171, %p172
      %p175 = scmp.ne.s32.totalorder %s160, %s174
      %p176 = scmp.eq.s32.totalorder %s21, 0
      %p177 = por %p175, %p176
      %s178 = ssub.s32 %s22, %s34
      %p179 = scmp.eq.s32.totalorder %s178, 0
      %s181 = sadd.s32 %s180, 1
      %s182 = scalar_select %p179, %s180, %s181
      %p185 = pneg %p179
      %p186 = scmp.eq.s32.totalorder %s15, 3
      %p187 = por %p185, %p186
      %p188 = scmp.ne.s32.totalorder %s180, %s183
      %p189 = scmp.eq.s32.totalorder %s15, 0
      %p190 = por %p188, %p189
      %p191 = scmp.ne.s32.totalorder %s180, %s183
      %p192 = scmp.eq.s32.totalorder %s20, 3
      %p193 = por %p191, %p192
      %p194 = scmp.ne.s32.totalorder %s183, %s184
      %p195 = scmp.eq.s32.totalorder %s20, 0
      %p196 = por %p194, %p195
      %p197 = scmp.ne.s32.totalorder %s183, %s184
      %p198 = scmp.eq.s32.totalorder %s21, 3
      %p199 = por %p197, %p198
      %p201 = scmp.ne.s32.totalorder %s184, %s200
      %p202 = scmp.eq.s32.totalorder %s21, 0
      %p203 = por %p201, %p202
      %p204 = scmp.le.s32.totalorder 1, %s15
      %p205 = scmp.lt.s32.totalorder %s15, 5
      %p206 = pnand %p204, %p205
      %p207 = pneg %p206
      // Predicated region
      $region9: #{tpu_custom_call.1} parent=5 // pred_check
        _
      $region10: #{tpu_custom_call.1} parent=5 // pred_check_branch
        %209 = sbr.rel (%p206) target = $region12
      $region11: #{tpu_custom_call.1} parent=5 // pred_region
        %s210 = ssub.s32 %s15, 1
        // Predicated region
        $region13: #{tpu_custom_call.1} parent=11 // pred_check
          %p211 = pneg %p128
        $region14: #{tpu_custom_call.1} parent=11 // pred_check_branch
          %213 = sbr.rel (%p211) target = $region16
        $region15: #{tpu_custom_call.1} parent=11 // pred_region
          _
        $region16: #{tpu_custom_call.1} parent=11 // pred_fallthru
          _
        // Predicated region
        $region17: #{tpu_custom_call.1} parent=11 // pred_check
          %p214 = pneg %p149
        $region18: #{tpu_custom_call.1} parent=11 // pred_check_branch
          %216 = sbr.rel (%p214) target = $region20
        $region19: #{tpu_custom_call.1} parent=11 // pred_region
          _
        $region20: #{tpu_custom_call.1} parent=11 // pred_fallthru
          _
        // Predicated region
        $region21: #{tpu_custom_call.1} parent=11 // pred_check
          %p217 = pneg %p170
        $region22: #{tpu_custom_call.1} parent=11 // pred_check_branch
          %219 = sbr.rel (%p217) target = $region24
        $region23: #{tpu_custom_call.1} parent=11 // pred_region
          _
        $region24: #{tpu_custom_call.1} parent=11 // pred_fallthru
          _
      $region12: #{tpu_custom_call.1} parent=5 // pred_fallthru
        _
      %p220 = scmp.lt.s32.totalorder %s15, 4
      // Predicated region
      $region25: #{tpu_custom_call.1} parent=5 // pred_check
        %p221 = pneg %p220
      $region26: #{tpu_custom_call.1} parent=5 // pred_check_branch
        %223 = sbr.rel (%p221) target = $region28
      $region27: #{tpu_custom_call.1} parent=5 // pred_region
        // Predicated region
        $region29: #{tpu_custom_call.1} parent=27 // pred_check
          %p224 = pneg %p49
        $region30: #{tpu_custom_call.1} parent=27 // pred_check_branch
          %226 = sbr.rel (%p224) target = $region32
        $region31: #{tpu_custom_call.1} parent=27 // pred_region
          %s227 = sand.u32 %s39, 1
          %s228 = sand.u32 %s39, 1
          %s229 = smul.addr %s228, 64
          %s230 = scalar_lea.vmem [#allocation3], %s229
          %s231 = smul.u32 16, %s22
          %s232 = smul.addr %s231, 2
          %s233 = sadd.s32 %s23, %s232
          %s234 = smul.addr %s233, 4
          %s235 = scalar_lea.vmem %s0, %s234
          // Predicated region
          $region33: #{tpu_custom_call.1} parent=31 // pred_check
            _
          $region34: #{tpu_custom_call.1} parent=31 // pred_check_branch
            %237 = sbr.rel (0) target = $region36
          $region35: #{tpu_custom_call.1} parent=31 // pred_region
            // Predicated region
            $region37: #{tpu_custom_call.1} parent=35 // pred_check
              _
            $region38: #{tpu_custom_call.1} parent=35 // pred_check_branch
              %239 = sbr.rel target = $region40
            $region39: #{tpu_custom_call.1} parent=35 // pred_region
              // Predicated region
              $region52: #{tpu_custom_call.1} parent=39 // pred_check
                _
              $region53: #{tpu_custom_call.1} parent=39 // pred_check_branch
                %284 = sbr.rel (0) target = $region55
              $region54: #{tpu_custom_call.1} parent=39 // pred_region
                loop: start=0, step=1, limit=1
                $region56: #{tpu_custom_call.1} parent=54 // loop_pre_header
                  _
                $region57: #{tpu_custom_call.1} parent=54 // loop_header
                  %s286 = sphi 0, %s290
                  %p287 = scmp.ge.s32.totalorder %s286, 1
                  %s291 = sphi %s235, %s235
                  %s292 = sphi %s230, %s230
                $region58: #{tpu_custom_call.1} parent=54 // loop_header_branch
                  %289 = sbr.rel (%p287) target = $region62
                $region59: #{tpu_custom_call.1} parent=54 // loop_body
                  _
                $region60: #{tpu_custom_call.1} parent=54 // loop_footer
                  %s290 = sadd.s32 1, %s286
                $region61: #{tpu_custom_call.1} parent=54 // loop_footer_branch
                  %285 = sbr.rel target = $region57
                $region62: #{tpu_custom_call.1} parent=54 // loop_exit
                  _
                loop: start=0, step=1, limit=1
                $region63: #{tpu_custom_call.1} parent=54 // loop_pre_header
                  _
                $region64: #{tpu_custom_call.1} parent=54 // loop_header
                  %s295 = sphi 0, %s299
                  %p296 = scmp.ge.s32.totalorder %s295, 1
                  %s300 = sphi %s235, %s235
                  %s301 = sphi %s230, %s230
                $region65: #{tpu_custom_call.1} parent=54 // loop_header_branch
                  %298 = sbr.rel (%p296) target = $region69
                $region66: #{tpu_custom_call.1} parent=54 // loop_body
                  %v302 = vld [vmem:[%s300] sm:$0xf]
                  %303 = vst [vmem:[%s301] sm:$0xf] %v302
                  %v304 = vld [vmem:[%s300 + $0x8] sm:$0xf]
                  %305 = vst [vmem:[%s301 + $0x4] sm:$0xf] %v304
                  %v306 = vld [vmem:[%s300 + $0x10] sm:$0xf]
                  %307 = vst [vmem:[%s301 + $0x8] sm:$0xf] %v306
                  %v308 = vld [vmem:[%s300 + $0x18] sm:$0xf]
                  %309 = vst [vmem:[%s301 + $0xc] sm:$0xf] %v308
                  %v310 = vld [vmem:[%s300 + $0x20] sm:$0xf]
                  %311 = vst [vmem:[%s301 + $0x10] sm:$0xf] %v310
                  %v312 = vld [vmem:[%s300 + $0x28] sm:$0xf]
                  %313 = vst [vmem:[%s301 + $0x14] sm:$0xf] %v312
                  %v314 = vld [vmem:[%s300 + $0x30] sm:$0xf]
                  %315 = vst [vmem:[%s301 + $0x18] sm:$0xf] %v314
                  %v316 = vld [vmem:[%s300 + $0x38] sm:$0xf]
                  %317 = vst [vmem:[%s301 + $0x1c] sm:$0xf] %v316
                  %v318 = vld [vmem:[%s300 + $0x40] sm:$0xf]
                  %319 = vst [vmem:[%s301 + $0x20] sm:$0xf] %v318
                  %v320 = vld [vmem:[%s300 + $0x48] sm:$0xf]
                  %321 = vst [vmem:[%s301 + $0x24] sm:$0xf] %v320
                  %v322 = vld [vmem:[%s300 + $0x50] sm:$0xf]
                  %323 = vst [vmem:[%s301 + $0x28] sm:$0xf] %v322
                  %v324 = vld [vmem:[%s300 + $0x58] sm:$0xf]
                  %325 = vst [vmem:[%s301 + $0x2c] sm:$0xf] %v324
                  %v326 = vld [vmem:[%s300 + $0x60] sm:$0xf]
                  %327 = vst [vmem:[%s301 + $0x30] sm:$0xf] %v326
                  %v328 = vld [vmem:[%s300 + $0x68] sm:$0xf]
                  %329 = vst [vmem:[%s301 + $0x34] sm:$0xf] %v328
                  %v330 = vld [vmem:[%s300 + $0x70] sm:$0xf]
                  %331 = vst [vmem:[%s301 + $0x38] sm:$0xf] %v330
                  %v332 = vld [vmem:[%s300 + $0x78] sm:$0xf]
                  %333 = vst [vmem:[%s301 + $0x3c] sm:$0xf] %v332
                $region67: #{tpu_custom_call.1} parent=54 // loop_footer
                  %s299 = sadd.s32 1, %s295
                $region68: #{tpu_custom_call.1} parent=54 // loop_footer_branch
                  %294 = sbr.rel target = $region64
                $region69: #{tpu_custom_call.1} parent=54 // loop_exit
                  _
              $region55: #{tpu_custom_call.1} parent=39 // pred_fallthru
                _
            $region40: #{tpu_custom_call.1} parent=35 // pred_fallthru
              _
            // Predicated region
            $region41: #{tpu_custom_call.1} parent=35 // pred_check
              _
            $region42: #{tpu_custom_call.1} parent=35 // pred_check_branch
              %241 = sbr.rel (0) target = $region44
            $region43: #{tpu_custom_call.1} parent=35 // pred_region
              loop: start=0, step=1, limit=1
              $region45: #{tpu_custom_call.1} parent=43 // loop_pre_header
                _
              $region46: #{tpu_custom_call.1} parent=43 // loop_header
                %s244 = sphi 0, %s248
                %p245 = scmp.ge.s32.totalorder %s244, 1
                %s249 = sphi %s235, %s235
                %s250 = sphi %s230, %s230
              $region47: #{tpu_custom_call.1} parent=43 // loop_header_branch
                %247 = sbr.rel (%p245) target = $region51
              $region48: #{tpu_custom_call.1} parent=43 // loop_body
                %v251 = vld [vmem:[%s249] sm:$0xf]
                %252 = vst [vmem:[%s250] sm:$0xf] %v251
                %v253 = vld [vmem:[%s249 + $0x8] sm:$0xf]
                %254 = vst [vmem:[%s250 + $0x4] sm:$0xf] %v253
                %v255 = vld [vmem:[%s249 + $0x10] sm:$0xf]
                %256 = vst [vmem:[%s250 + $0x8] sm:$0xf] %v255
                %v257 = vld [vmem:[%s249 + $0x18] sm:$0xf]
                %258 = vst [vmem:[%s250 + $0xc] sm:$0xf] %v257
                %v259 = vld [vmem:[%s249 + $0x20] sm:$0xf]
                %260 = vst [vmem:[%s250 + $0x10] sm:$0xf] %v259
                %v261 = vld [vmem:[%s249 + $0x28] sm:$0xf]
                %262 = vst [vmem:[%s250 + $0x14] sm:$0xf] %v261
                %v263 = vld [vmem:[%s249 + $0x30] sm:$0xf]
                %264 = vst [vmem:[%s250 + $0x18] sm:$0xf] %v263
                %v265 = vld [vmem:[%s249 + $0x38] sm:$0xf]
                %266 = vst [vmem:[%s250 + $0x1c] sm:$0xf] %v265
                %v267 = vld [vmem:[%s249 + $0x40] sm:$0xf]
                %268 = vst [vmem:[%s250 + $0x20] sm:$0xf] %v267
                %v269 = vld [vmem:[%s249 + $0x48] sm:$0xf]
                %270 = vst [vmem:[%s250 + $0x24] sm:$0xf] %v269
                %v271 = vld [vmem:[%s249 + $0x50] sm:$0xf]
                %272 = vst [vmem:[%s250 + $0x28] sm:$0xf] %v271
                %v273 = vld [vmem:[%s249 + $0x58] sm:$0xf]
                %274 = vst [vmem:[%s250 + $0x2c] sm:$0xf] %v273
                %v275 = vld [vmem:[%s249 + $0x60] sm:$0xf]
                %276 = vst [vmem:[%s250 + $0x30] sm:$0xf] %v275
                %v277 = vld [vmem:[%s249 + $0x68] sm:$0xf]
                %278 = vst [vmem:[%s250 + $0x34] sm:$0xf] %v277
                %v279 = vld [vmem:[%s249 + $0x70] sm:$0xf]
                %280 = vst [vmem:[%s250 + $0x38] sm:$0xf] %v279
                %v281 = vld [vmem:[%s249 + $0x78] sm:$0xf]
                %282 = vst [vmem:[%s250 + $0x3c] sm:$0xf] %v281
              $region49: #{tpu_custom_call.1} parent=43 // loop_footer
                %s248 = sadd.s32 1, %s244
              $region50: #{tpu_custom_call.1} parent=43 // loop_footer_branch
                %243 = sbr.rel target = $region46
              $region51: #{tpu_custom_call.1} parent=43 // loop_exit
                _
            $region44: #{tpu_custom_call.1} parent=35 // pred_fallthru
              _
          $region36: #{tpu_custom_call.1} parent=31 // pred_fallthru
            _
          %334 = vnop
        $region32: #{tpu_custom_call.1} parent=27 // pred_fallthru
          _
        // Predicated region
        $region70: #{tpu_custom_call.1} parent=27 // pred_check
          %p335 = pneg %p75
        $region71: #{tpu_custom_call.1} parent=27 // pred_check_branch
          %337 = sbr.rel (%p335) target = $region73
        $region72: #{tpu_custom_call.1} parent=27 // pred_region
          %s338 = smul.u32 16, %s23
          %p339 = scmp.lt.s32.totalorder %s338, 31
          %s340 = scalar_select %p339, %s338, 31
          %s341 = smul.addr %s340, 4
          %s342 = scalar_lea.vmem %s1, %s341
          %s343 = smul.u32 16, %s23
        $region73: #{tpu_custom_call.1} parent=27 // pred_fallthru
          _
        // Predicated region
        $region74: #{tpu_custom_call.1} parent=27 // pred_check
          %p344 = pneg %p101
        $region75: #{tpu_custom_call.1} parent=27 // pred_check_branch
          %346 = sbr.rel (%p344) target = $region77
        $region76: #{tpu_custom_call.1} parent=27 // pred_region
          %s347 = smul.u32 16, %s22
          %p348 = scmp.lt.s32.totalorder %s347, 31
          %s349 = scalar_select %p348, %s347, 31
          %s350 = smul.addr %s349, 8
          %s351 = scalar_lea.vmem %s2, %s350
          %s352 = smul.u32 16, %s22
        $region77: #{tpu_custom_call.1} parent=27 // pred_fallthru
          _
      $region28: #{tpu_custom_call.1} parent=5 // pred_fallthru
        _
      %p353 = scmp.le.s32.totalorder 1, %s15
      %p354 = scmp.lt.s32.totalorder %s15, 5
      %p355 = pnand %p353, %p354
      %p356 = pneg %p355
      // Predicated region
      $region78: #{tpu_custom_call.1} parent=5 // pred_check
        _
      $region79: #{tpu_custom_call.1} parent=5 // pred_check_branch
        %358 = sbr.rel (%p355) target = $region81
      $region80: #{tpu_custom_call.1} parent=5 // pred_region
        %s359 = ssub.s32 %s15, 1
        %s360 = sand.u32 %s42, 1
        %s361 = sand.u32 %s42, 1
        %s362 = smul.addr %s361, 64
        %s363 = scalar_lea.vmem [#allocation3], %s362
        // Predicated region
        $region82: #{tpu_custom_call.1} parent=80 // pred_check
          %p364 = pneg %p55
        $region83: #{tpu_custom_call.1} parent=80 // pred_check_branch
          %366 = sbr.rel (%p364) target = $region85
        $region84: #{tpu_custom_call.1} parent=80 // pred_region
          _
        $region85: #{tpu_custom_call.1} parent=80 // pred_fallthru
          _
        %s367 = sand.u32 %s42, 1
        %s368 = sand.u32 %s42, 1
        %s369 = smul.addr %s368, 64
        %s370 = scalar_lea.vmem [#allocation3], %s369
        %p371 = pneg %p55
        %p372 = pneg %p52
        %s373 = smul.u32 16, %s25
        %p374 = scmp.lt.s32.totalorder %s373, 31
        %s375 = scalar_select %p374, %s373, 31
        %s376 = smul.addr %s375, 4
        %s377 = scalar_lea.vmem %s1, %s376
        %p378 = pneg %p81
        %p379 = pneg %p78
        %s380 = smul.u32 16, %s24
        %p381 = scmp.lt.s32.totalorder %s380, 31
        %s382 = scalar_select %p381, %s380, 31
        %s383 = smul.addr %s382, 8
        %s384 = scalar_lea.vmem %s2, %s383
        %p385 = pneg %p107
        %p386 = pneg %p104
        %p387 = pneg %p128
        %p388 = pneg %p125
        %p389 = pneg %p149
        %p390 = pneg %p146
        %p391 = pneg %p170
        %p392 = pneg %p167
        %p393 = pneg %p196
        %p394 = pneg %p193
        %s395 = sand.u32 %s183, 1
        %s396 = scalar_lea.sflag [#allocation5], %s395
        %s397 = sand.u32 %s183, 1
        %s398 = smul.addr %s397, 128
        %s399 = scalar_lea.vmem [#allocation4], %s398
        %s400 = smul.u32 16, %s24
        %s401 = smul.u32 16, %s25
        %p402 = scmp.lt.s32.totalorder %s401, 31
        %s403 = scalar_select %p402, %s401, 31
        %s404 = smul.addr %s403, 4
        %s405 = scalar_lea.vmem %s1, %s404
        %s406 = smul.u32 16, %s25
        %s407 = smul.u32 16, %s24
        %p408 = scmp.lt.s32.totalorder %s407, 31
        %s409 = scalar_select %p408, %s407, 31
        %s410 = smul.addr %s409, 8
        %s411 = scalar_lea.vmem %s2, %s410
        %s412 = smul.u32 16, %s24
        %s413 = smul.u32 16, %s24
        %p415 = scmp.eq.s32.totalorder %s25, 0
        // Predicated region
        $region86: #{tpu_custom_call.1} parent=80 // pred_check
          %p416 = pneg %p415
        $region87: #{tpu_custom_call.1} parent=80 // pred_check_branch
          %418 = sbr.rel (%p416) target = $region89
        $region88: #{tpu_custom_call.1} parent=80 // pred_region
          %vm419 = vcmask 400384
          %420 = vst.msk [vmem:[#allocation2] sm:$0xff] %vm419, 0.0
          %421 = vst.msk [vmem:[#allocation2 + $0x8] sm:$0xff] %vm419, 0.0
          %422 = vst.msk [vmem:[#allocation2 + $0x10] sm:$0xff] %vm419, 0.0
          %423 = vst.msk [vmem:[#allocation2 + $0x18] sm:$0xff] %vm419, 0.0
          %424 = vst.msk [vmem:[#allocation2 + $0x20] sm:$0xff] %vm419, 0.0
          %425 = vst.msk [vmem:[#allocation2 + $0x28] sm:$0xff] %vm419, 0.0
          %426 = vst.msk [vmem:[#allocation2 + $0x30] sm:$0xff] %vm419, 0.0
          %427 = vst.msk [vmem:[#allocation2 + $0x38] sm:$0xff] %vm419, 0.0
          %428 = vst.msk [vmem:[#allocation2 + $0x40] sm:$0xff] %vm419, 0.0
          %429 = vst.msk [vmem:[#allocation2 + $0x48] sm:$0xff] %vm419, 0.0
          %430 = vst.msk [vmem:[#allocation2 + $0x50] sm:$0xff] %vm419, 0.0
          %431 = vst.msk [vmem:[#allocation2 + $0x58] sm:$0xff] %vm419, 0.0
          %432 = vst.msk [vmem:[#allocation2 + $0x60] sm:$0xff] %vm419, 0.0
          %433 = vst.msk [vmem:[#allocation2 + $0x68] sm:$0xff] %vm419, 0.0
          %434 = vst.msk [vmem:[#allocation2 + $0x70] sm:$0xff] %vm419, 0.0
          %435 = vst.msk [vmem:[#allocation2 + $0x78] sm:$0xff] %vm419, 0.0
        $region89: #{tpu_custom_call.1} parent=80 // pred_fallthru
          _
        %v436 = vld [vmem:[#allocation2] sm:$0xff]
        %v437 = vld [vmem:[#allocation2 + $0x8] sm:$0xff]
        %v438 = vld [vmem:[#allocation2 + $0x10] sm:$0xff]
        %v439 = vld [vmem:[#allocation2 + $0x18] sm:$0xff]
        %v440 = vld [vmem:[#allocation2 + $0x20] sm:$0xff]
        %v441 = vld [vmem:[#allocation2 + $0x28] sm:$0xff]
        %v442 = vld [vmem:[#allocation2 + $0x30] sm:$0xff]
        %v443 = vld [vmem:[#allocation2 + $0x38] sm:$0xff]
        %v444 = vld [vmem:[#allocation2 + $0x40] sm:$0xff]
        %v445 = vld [vmem:[#allocation2 + $0x48] sm:$0xff]
        %v446 = vld [vmem:[#allocation2 + $0x50] sm:$0xff]
        %v447 = vld [vmem:[#allocation2 + $0x58] sm:$0xff]
        %v448 = vld [vmem:[#allocation2 + $0x60] sm:$0xff]
        %v449 = vld [vmem:[#allocation2 + $0x68] sm:$0xff]
        %v450 = vld [vmem:[#allocation2 + $0x70] sm:$0xff]
        %v451 = vld [vmem:[#allocation2 + $0x78] sm:$0xff]
        %v452 = vld [vmem:[%s363] sm:$0xf]
        %v453 = vld [vmem:[%s363 + $0x4] sm:$0xf]
        %v454 = vld [vmem:[%s363 + $0x8] sm:$0xf]
        %v455 = vld [vmem:[%s363 + $0xc] sm:$0xf]
        %v456 = vld [vmem:[%s363 + $0x10] sm:$0xf]
        %v457 = vld [vmem:[%s363 + $0x14] sm:$0xf]
        %v458 = vld [vmem:[%s363 + $0x18] sm:$0xf]
        %v459 = vld [vmem:[%s363 + $0x1c] sm:$0xf]
        %v460 = vld [vmem:[%s363 + $0x20] sm:$0xf]
        %v461 = vld [vmem:[%s363 + $0x24] sm:$0xf]
        %v462 = vld [vmem:[%s363 + $0x28] sm:$0xf]
        %v463 = vld [vmem:[%s363 + $0x2c] sm:$0xf]
        %v464 = vld [vmem:[%s363 + $0x30] sm:$0xf]
        %v465 = vld [vmem:[%s363 + $0x34] sm:$0xf]
        %v466 = vld [vmem:[%s363 + $0x38] sm:$0xf]
        %v467 = vld [vmem:[%s363 + $0x3c] sm:$0xf]
        %v468 = vld [vmem:[%s405] sm:$0xf]
        %v469 = vld [vmem:[%s405 + $0x4] sm:$0xf]
        %v470 = vld [vmem:[%s405 + $0x8] sm:$0xf]
        %v471 = vld [vmem:[%s405 + $0xc] sm:$0xf]
        %v472 = vld [vmem:[%s405 + $0x10] sm:$0xf]
        %v473 = vld [vmem:[%s405 + $0x14] sm:$0xf]
        %v474 = vld [vmem:[%s405 + $0x18] sm:$0xf]
        %v475 = vld [vmem:[%s405 + $0x1c] sm:$0xf]
        %v476 = vld [vmem:[%s405 + $0x20] sm:$0xf]
        %v477 = vld [vmem:[%s405 + $0x24] sm:$0xf]
        %v478 = vld [vmem:[%s405 + $0x28] sm:$0xf]
        %v479 = vld [vmem:[%s405 + $0x2c] sm:$0xf]
        %v480 = vld [vmem:[%s405 + $0x30] sm:$0xf]
        %v481 = vld [vmem:[%s405 + $0x34] sm:$0xf]
        %v482 = vld [vmem:[%s405 + $0x38] sm:$0xf]
        %v483 = vld [vmem:[%s405 + $0x3c] sm:$0xf]
        %v500 = vunpack.c.l.b16 %v452
        %v501 = vunpack.c.l.b16 %v453
        %v502 = vunpack.c.l.b16 %v454
        %v503 = vunpack.c.l.b16 %v455
        %v504 = vunpack.c.l.b16 %v456
        %v505 = vunpack.c.l.b16 %v457
        %v506 = vunpack.c.l.b16 %v458
        %v507 = vunpack.c.l.b16 %v459
        %v508 = vunpack.c.l.b16 %v460
        %v509 = vunpack.c.l.b16 %v461
        %v510 = vunpack.c.l.b16 %v462
        %v511 = vunpack.c.l.b16 %v463
        %v512 = vunpack.c.l.b16 %v464
        %v513 = vunpack.c.l.b16 %v465
        %v514 = vunpack.c.l.b16 %v466
        %v515 = vunpack.c.l.b16 %v467
        %v516 = vpack.c.b16 %v501, %v500
        %v517 = vpack.c.b16 %v503, %v502
        %v518 = vpack.c.b16 %v505, %v504
        %v519 = vpack.c.b16 %v507, %v506
        %v520 = vpack.c.b16 %v509, %v508
        %v521 = vpack.c.b16 %v511, %v510
        %v522 = vpack.c.b16 %v513, %v512
        %v523 = vpack.c.b16 %v515, %v514
        %v548 = vunpack.c.l.b16 %v468
        %v549 = vunpack.c.l.b16 %v469
        %v550 = vunpack.c.l.b16 %v470
        %v551 = vunpack.c.l.b16 %v471
        %v552 = vunpack.c.l.b16 %v472
        %v553 = vunpack.c.l.b16 %v473
        %v554 = vunpack.c.l.b16 %v474
        %v555 = vunpack.c.l.b16 %v475
        %v556 = vunpack.c.l.b16 %v476
        %v557 = vunpack.c.l.b16 %v477
        %v558 = vunpack.c.l.b16 %v478
        %v559 = vunpack.c.l.b16 %v479
        %v560 = vunpack.c.l.b16 %v480
        %v561 = vunpack.c.l.b16 %v481
        %v562 = vunpack.c.l.b16 %v482
        %v563 = vunpack.c.l.b16 %v483
        %v564 = vpack.c.b16 %v549, %v548
        %v565 = vpack.c.b16 %v551, %v550
        %v566 = vpack.c.b16 %v553, %v552
        %v567 = vpack.c.b16 %v555, %v554
        %v568 = vpack.c.b16 %v557, %v556
        %v569 = vpack.c.b16 %v559, %v558
        %v570 = vpack.c.b16 %v561, %v560
        %v571 = vpack.c.b16 %v563, %v562
        %580 = vmatprep.subr.bf16.mxu0 0
        %581 = vmatpush1.bf16.msra.mxu0 %v564
        %582 = vmatprep.subr.bf16.mxu0 0
        %583 = vmatpush1.bf16.msra.mxu0 %v565
        %584 = vmatprep.subr.bf16.mxu0 0
        %585 = vmatpush1.bf16.msra.mxu0 %v566
        %586 = vmatprep.subr.bf16.mxu0 0
        %587 = vmatpush1.bf16.msra.mxu0 %v567
        %588 = vmatprep.subr.bf16.mxu0 0
        %589 = vmatpush1.bf16.msra.mxu0 %v568
        %590 = vmatprep.subr.bf16.mxu0 0
        %591 = vmatpush1.bf16.msra.mxu0 %v569
        %592 = vmatprep.subr.bf16.mxu0 0
        %593 = vmatpush1.bf16.msra.mxu0 %v570
        %594 = vmatprep.subr.bf16.mxu0 0
        %595 = vmatpush1.bf16.msra.mxu0 %v571
        %596 = vmatprep.subr.bf16.mxu0 0
        %597 = vmatpush1.bf16.msra.mxu0 0
        %598 = vmatprep.subr.bf16.mxu0 0
        %599 = vmatpush1.bf16.msra.mxu0 0
        %600 = vmatprep.subr.bf16.mxu0 0
        %601 = vmatpush1.bf16.msra.mxu0 0
        %602 = vmatprep.subr.bf16.mxu0 0
        %603 = vmatpush1.bf16.msra.mxu0 0
        %604 = vmatprep.subr.bf16.mxu0 0
        %605 = vmatpush1.bf16.msra.mxu0 0
        %606 = vmatprep.subr.bf16.mxu0 0
        %607 = vmatpush1.bf16.msra.mxu0 0
        %608 = vmatprep.subr.bf16.mxu0 0
        %609 = vmatpush1.bf16.msra.mxu0 0
        %610 = vmatprep.subr.bf16.mxu0 0
        %611 = vmatpush1.bf16.msra.mxu0 0
        %612 = vmatprep.mubr.bf16.mxu0 0
        %613 = vmatmul.mubr.bf16.gmra.mrb[0].mxu0 %v516
        %v614 = vpop.f32.mrb[0].mxu0
        %v615 = vadd.f32 0.0, %v614
        %v616 = vpop.f32.mrb[0].mxu0
        %v617 = vpop.f32.mrb[0].mxu0
        %v618 = vadd.f32 0.0, %v617
        %v619 = vpop.f32.mrb[0].mxu0
        %620 = vmatprep.mubr.bf16.mxu0 0
        %621 = vmatmul.mubr.bf16.gmra.mrb[0].mxu0 %v517
        %v622 = vpop.f32.mrb[0].mxu0
        %v623 = vadd.f32 0.0, %v622
        %v624 = vpop.f32.mrb[0].mxu0
        %v625 = vpop.f32.mrb[0].mxu0
        %v626 = vadd.f32 0.0, %v625
        %v627 = vpop.f32.mrb[0].mxu0
        %628 = vmatprep.mubr.bf16.mxu0 0
        %629 = vmatmul.mubr.bf16.gmra.mrb[0].mxu0 %v518
        %v630 = vpop.f32.mrb[0].mxu0
        %v631 = vadd.f32 0.0, %v630
        %v632 = vpop.f32.mrb[0].mxu0
        %v633 = vpop.f32.mrb[0].mxu0
        %v634 = vadd.f32 0.0, %v633
        %v635 = vpop.f32.mrb[0].mxu0
        %636 = vmatprep.mubr.bf16.mxu0 0
        %637 = vmatmul.mubr.bf16.gmra.mrb[0].mxu0 %v519
        %v638 = vpop.f32.mrb[0].mxu0
        %v639 = vadd.f32 0.0, %v638
        %v640 = vpop.f32.mrb[0].mxu0
        %v641 = vpop.f32.mrb[0].mxu0
        %v642 = vadd.f32 0.0, %v641
        %v643 = vpop.f32.mrb[0].mxu0
        %644 = vmatprep.mubr.bf16.mxu0 0
        %645 = vmatmul.mubr.bf16.gmra.mrb[0].mxu0 %v520
        %v646 = vpop.f32.mrb[0].mxu0
        %v647 = vadd.f32 0.0, %v646
        %v648 = vpop.f32.mrb[0].mxu0
        %v649 = vpop.f32.mrb[0].mxu0
        %v650 = vadd.f32 0.0, %v649
        %v651 = vpop.f32.mrb[0].mxu0
        %652 = vmatprep.mubr.bf16.mxu0 0
        %653 = vmatmul.mubr.bf16.gmra.mrb[0].mxu0 %v521
        %v654 = vpop.f32.mrb[0].mxu0
        %v655 = vadd.f32 0.0, %v654
        %v656 = vpop.f32.mrb[0].mxu0
        %v657 = vpop.f32.mrb[0].mxu0
        %v658 = vadd.f32 0.0, %v657
        %v659 = vpop.f32.mrb[0].mxu0
        %660 = vmatprep.mubr.bf16.mxu0 0
        %661 = vmatmul.mubr.bf16.gmra.mrb[0].mxu0 %v522
        %v662 = vpop.f32.mrb[0].mxu0
        %v663 = vadd.f32 0.0, %v662
        %v664 = vpop.f32.mrb[0].mxu0
        %v665 = vpop.f32.mrb[0].mxu0
        %v666 = vadd.f32 0.0, %v665
        %v667 = vpop.f32.mrb[0].mxu0
        %668 = vmatprep.mubr.bf16.mxu0 0
        %669 = vmatmul.mubr.bf16.gmra.mrb[0].mxu0 %v523
        %v670 = vpop.f32.mrb[0].mxu0
        %v671 = vadd.f32 0.0, %v670
        %v672 = vpop.f32.mrb[0].mxu0
        %v673 = vpop.f32.mrb[0].mxu0
        %v674 = vadd.f32 0.0, %v673
        %v675 = vpop.f32.mrb[0].mxu0
        %676 = vdwg.mxu0
        %v677 = vadd.f32 %v436, %v615
        %v678 = vadd.f32 %v437, %v618
        %v679 = vadd.f32 %v438, %v623
        %v680 = vadd.f32 %v439, %v626
        %v681 = vadd.f32 %v440, %v631
        %v682 = vadd.f32 %v441, %v634
        %v683 = vadd.f32 %v442, %v639
        %v684 = vadd.f32 %v443, %v642
        %v685 = vadd.f32 %v444, %v647
        %v686 = vadd.f32 %v445, %v650
        %v687 = vadd.f32 %v446, %v655
        %v688 = vadd.f32 %v447, %v658
        %v689 = vadd.f32 %v448, %v663
        %v690 = vadd.f32 %v449, %v666
        %v691 = vadd.f32 %v450, %v671
        %v692 = vadd.f32 %v451, %v674
        %vm693 = vcmask 400384
        %694 = vst.msk [vmem:[#allocation2] sm:$0xff] %vm693, %v677
        %695 = vst.msk [vmem:[#allocation2 + $0x8] sm:$0xff] %vm693, %v678
        %696 = vst.msk [vmem:[#allocation2 + $0x10] sm:$0xff] %vm693, %v679
        %697 = vst.msk [vmem:[#allocation2 + $0x18] sm:$0xff] %vm693, %v680
        %698 = vst.msk [vmem:[#allocation2 + $0x20] sm:$0xff] %vm693, %v681
        %699 = vst.msk [vmem:[#allocation2 + $0x28] sm:$0xff] %vm693, %v682
        %700 = vst.msk [vmem:[#allocation2 + $0x30] sm:$0xff] %vm693, %v683
        %701 = vst.msk [vmem:[#allocation2 + $0x38] sm:$0xff] %vm693, %v684
        %702 = vst.msk [vmem:[#allocation2 + $0x40] sm:$0xff] %vm693, %v685
        %703 = vst.msk [vmem:[#allocation2 + $0x48] sm:$0xff] %vm693, %v686
        %704 = vst.msk [vmem:[#allocation2 + $0x50] sm:$0xff] %vm693, %v687
        %705 = vst.msk [vmem:[#allocation2 + $0x58] sm:$0xff] %vm693, %v688
        %706 = vst.msk [vmem:[#allocation2 + $0x60] sm:$0xff] %vm693, %v689
        %707 = vst.msk [vmem:[#allocation2 + $0x68] sm:$0xff] %vm693, %v690
        %708 = vst.msk [vmem:[#allocation2 + $0x70] sm:$0xff] %vm693, %v691
        %709 = vst.msk [vmem:[#allocation2 + $0x78] sm:$0xff] %vm693, %v692
        %p710 = scmp.eq.s32.totalorder %s25, 1
        // Predicated region
        $region90: #{tpu_custom_call.1} parent=80 // pred_check
          %p711 = pneg %p710
        $region91: #{tpu_custom_call.1} parent=80 // pred_check_branch
          %713 = sbr.rel (%p711) target = $region93
        $region92: #{tpu_custom_call.1} parent=80 // pred_region
          %v714 = vld [vmem:[#allocation2] sm:$0xff]
          %v715 = vld [vmem:[#allocation2 + $0x8] sm:$0xff]
          %v716 = vld [vmem:[#allocation2 + $0x10] sm:$0xff]
          %v717 = vld [vmem:[#allocation2 + $0x18] sm:$0xff]
          %v718 = vld [vmem:[#allocation2 + $0x20] sm:$0xff]
          %v719 = vld [vmem:[#allocation2 + $0x28] sm:$0xff]
          %v720 = vld [vmem:[#allocation2 + $0x30] sm:$0xff]
          %v721 = vld [vmem:[#allocation2 + $0x38] sm:$0xff]
          %v722 = vld [vmem:[#allocation2 + $0x40] sm:$0xff]
          %v723 = vld [vmem:[#allocation2 + $0x48] sm:$0xff]
          %v724 = vld [vmem:[#allocation2 + $0x50] sm:$0xff]
          %v725 = vld [vmem:[#allocation2 + $0x58] sm:$0xff]
          %v726 = vld [vmem:[#allocation2 + $0x60] sm:$0xff]
          %v727 = vld [vmem:[#allocation2 + $0x68] sm:$0xff]
          %v728 = vld [vmem:[#allocation2 + $0x70] sm:$0xff]
          %v729 = vld [vmem:[#allocation2 + $0x78] sm:$0xff]
          %v730 = vmax.f32 %v714, 1.0
          %v731 = vmax.f32 %v715, 1.0
          %v732 = vmax.f32 %v716, 1.0
          %v733 = vmax.f32 %v717, 1.0
          %v734 = vmax.f32 %v718, 1.0
          %v735 = vmax.f32 %v719, 1.0
          %v736 = vmax.f32 %v720, 1.0
          %v737 = vmax.f32 %v721, 1.0
          %v738 = vmax.f32 %v722, 1.0
          %v739 = vmax.f32 %v723, 1.0
          %v740 = vmax.f32 %v724, 1.0
          %v741 = vmax.f32 %v725, 1.0
          %v742 = vmax.f32 %v726, 1.0
          %v743 = vmax.f32 %v727, 1.0
          %v744 = vmax.f32 %v728, 1.0
          %v745 = vmax.f32 %v729, 1.0
          %v746 = vrsqrt.pop %v730
          %v747 = vrsqrt.pop %v731
          %v748 = vrsqrt.pop %v732
          %v749 = vrsqrt.pop %v733
          %v750 = vrsqrt.pop %v734
          %v751 = vrsqrt.pop %v735
          %v752 = vrsqrt.pop %v736
          %v753 = vrsqrt.pop %v737
          %v754 = vrsqrt.pop %v738
          %v755 = vrsqrt.pop %v739
          %v756 = vrsqrt.pop %v740
          %v757 = vrsqrt.pop %v741
          %v758 = vrsqrt.pop %v742
          %v759 = vrsqrt.pop %v743
          %v760 = vrsqrt.pop %v744
          %v761 = vrsqrt.pop %v745
          %763 = vset.pattern.permute.xlu0 48
          %764 = vperm.xlu0 %763, %v746
          %v765 = vpop.permute.xlu0 %764
          %768 = vset.pattern.permute.xlu0 48
          %769 = vperm.xlu0 %768, %v747
          %v770 = vpop.permute.xlu0 %769
          %773 = vset.pattern.permute.xlu0 48
          %774 = vperm.xlu0 %773, %v748
          %v775 = vpop.permute.xlu0 %774
          %778 = vset.pattern.permute.xlu0 48
          %779 = vperm.xlu0 %778, %v749
          %v780 = vpop.permute.xlu0 %779
          %783 = vset.pattern.permute.xlu0 48
          %784 = vperm.xlu0 %783, %v750
          %v785 = vpop.permute.xlu0 %784
          %788 = vset.pattern.permute.xlu0 48
          %789 = vperm.xlu0 %788, %v751
          %v790 = vpop.permute.xlu0 %789
          %793 = vset.pattern.permute.xlu0 48
          %794 = vperm.xlu0 %793, %v752
          %v795 = vpop.permute.xlu0 %794
          %798 = vset.pattern.permute.xlu0 48
          %799 = vperm.xlu0 %798, %v753
          %v800 = vpop.permute.xlu0 %799
          %803 = vset.pattern.permute.xlu0 48
          %804 = vperm.xlu0 %803, %v754
          %v805 = vpop.permute.xlu0 %804
          %808 = vset.pattern.permute.xlu0 48
          %809 = vperm.xlu0 %808, %v755
          %v810 = vpop.permute.xlu0 %809
          %813 = vset.pattern.permute.xlu0 48
          %814 = vperm.xlu0 %813, %v756
          %v815 = vpop.permute.xlu0 %814
          %818 = vset.pattern.permute.xlu0 48
          %819 = vperm.xlu0 %818, %v757
          %v820 = vpop.permute.xlu0 %819
          %823 = vset.pattern.permute.xlu0 48
          %824 = vperm.xlu0 %823, %v758
          %v825 = vpop.permute.xlu0 %824
          %828 = vset.pattern.permute.xlu0 48
          %829 = vperm.xlu0 %828, %v759
          %v830 = vpop.permute.xlu0 %829
          %833 = vset.pattern.permute.xlu0 48
          %834 = vperm.xlu0 %833, %v760
          %v835 = vpop.permute.xlu0 %834
          %838 = vset.pattern.permute.xlu0 48
          %839 = vperm.xlu0 %838, %v761
          %v840 = vpop.permute.xlu0 %839
          %v842 = vmul.f32 %v765, %v714
          %v843 = vmul.f32 %v770, %v715
          %v844 = vmul.f32 %v775, %v716
          %v845 = vmul.f32 %v780, %v717
          %v846 = vmul.f32 %v785, %v718
          %v847 = vmul.f32 %v790, %v719
          %v848 = vmul.f32 %v795, %v720
          %v849 = vmul.f32 %v800, %v721
          %v850 = vmul.f32 %v805, %v722
          %v851 = vmul.f32 %v810, %v723
          %v852 = vmul.f32 %v815, %v724
          %v853 = vmul.f32 %v820, %v725
          %v854 = vmul.f32 %v825, %v726
          %v855 = vmul.f32 %v830, %v727
          %v856 = vmul.f32 %v835, %v728
          %v857 = vmul.f32 %v840, %v729
          %v858 = vld [vmem:[%s3] sm:$0xff]
          %v859 = vld [vmem:[%s3 + $0x8] sm:$0xff]
          %v860 = vld [vmem:[%s3 + $0x10] sm:$0xff]
          %v861 = vld [vmem:[%s3 + $0x18] sm:$0xff]
          %v862 = vld [vmem:[%s3 + $0x20] sm:$0xff]
          %v863 = vld [vmem:[%s3 + $0x28] sm:$0xff]
          %v864 = vld [vmem:[%s411] sm:$0xff]
          %v865 = vld [vmem:[%s411 + $0x8] sm:$0xff]
          %v866 = vld [vmem:[%s411 + $0x10] sm:$0xff]
          %v867 = vld [vmem:[%s411 + $0x18] sm:$0xff]
          %v868 = vld [vmem:[%s411 + $0x20] sm:$0xff]
          %v869 = vld [vmem:[%s411 + $0x28] sm:$0xff]
          %v870 = vld [vmem:[%s411 + $0x30] sm:$0xff]
          %v871 = vld [vmem:[%s411 + $0x38] sm:$0xff]
          %v872 = vld [vmem:[%s411 + $0x40] sm:$0xff]
          %v873 = vld [vmem:[%s411 + $0x48] sm:$0xff]
          %v874 = vld [vmem:[%s411 + $0x50] sm:$0xff]
          %v875 = vld [vmem:[%s411 + $0x58] sm:$0xff]
          %v876 = vld [vmem:[%s411 + $0x60] sm:$0xff]
          %v877 = vld [vmem:[%s411 + $0x68] sm:$0xff]
          %v878 = vld [vmem:[%s411 + $0x70] sm:$0xff]
          %v879 = vld [vmem:[%s411 + $0x78] sm:$0xff]
          %v880 = vld [vmem:[%s4] sm:$0xff]
          %v881 = vld [vmem:[%s4 + $0x8] sm:$0xff]
          %v882 = vld [vmem:[%s4 + $0x10] sm:$0xff]
          %v883 = vld [vmem:[%s4 + $0x18] sm:$0xff]
          %v884 = vld [vmem:[%s4 + $0x20] sm:$0xff]
          %v885 = vld [vmem:[%s4 + $0x28] sm:$0xff]
          %vm886 = vcmask 392192
          %v888 = vsel %vm886, %v864, 0
          %v891 = vsel %vm886, %v865, 0
          %v894 = vsel %vm886, %v866, 0
          %v897 = vsel %vm886, %v867, 0
          %v900 = vsel %vm886, %v868, 0
          %v903 = vsel %vm886, %v869, 0
          %v906 = vsel %vm886, %v870, 0
          %v909 = vsel %vm886, %v871, 0
          %v912 = vsel %vm886, %v872, 0
          %v915 = vsel %vm886, %v873, 0
          %v918 = vsel %vm886, %v874, 0
          %v921 = vsel %vm886, %v875, 0
          %v924 = vsel %vm886, %v876, 0
          %v927 = vsel %vm886, %v877, 0
          %v930 = vsel %vm886, %v878, 0
          %v933 = vsel %vm886, %v879, 0
          %935 = vmatprep.subr.mxu0 0.0
          %936 = vmatpush1.msra.mxu0 %v880
          %937 = vmatprep.subr.mxu0 0.0
          %938 = vmatpush1.msra.mxu0 %v881
          %939 = vmatprep.subr.mxu0 0.0
          %940 = vmatpush1.msra.mxu0 %v882
          %941 = vmatprep.subr.mxu0 0.0
          %942 = vmatpush1.msra.mxu0 %v883
          %943 = vmatprep.subr.mxu0 0.0
          %944 = vmatpush1.msra.mxu0 %v884
          %945 = vmatprep.subr.mxu0 0.0
          %946 = vmatpush1.msra.mxu0 %v885
          %947 = vmatprep.subr.mxu0 0.0
          %948 = vmatpush1.msra.mxu0 0.0
          %949 = vmatprep.subr.mxu0 0.0
          %950 = vmatpush1.msra.mxu0 0.0
          %951 = vmatprep.subr.mxu0 0.0
          %952 = vmatpush1.msra.mxu0 0.0
          %953 = vmatprep.subr.mxu0 0.0
          %954 = vmatpush1.msra.mxu0 0.0
          %955 = vmatprep.subr.mxu0 0.0
          %956 = vmatpush1.msra.mxu0 0.0
          %957 = vmatprep.subr.mxu0 0.0
          %958 = vmatpush1.msra.mxu0 0.0
          %959 = vmatprep.subr.mxu0 0.0
          %960 = vmatpush1.msra.mxu0 0.0
          %961 = vmatprep.subr.mxu0 0.0
          %962 = vmatpush1.msra.mxu0 0.0
          %963 = vmatprep.subr.mxu0 0.0
          %964 = vmatpush1.msra.mxu0 0.0
          %965 = vmatprep.subr.mxu0 0.0
          %966 = vmatpush1.msra.mxu0 0.0
          %967 = vmatprep.subr.mxu0 0.0
          %968 = vmatpush1.msra.mxu0 0.0
          %969 = vmatprep.subr.mxu0 0.0
          %970 = vmatpush1.msra.mxu0 0.0
          %971 = vmatprep.subr.mxu0 0.0
          %972 = vmatpush1.msra.mxu0 0.0
          %973 = vmatprep.subr.mxu0 0.0
          %974 = vmatpush1.msra.mxu0 0.0
          %975 = vmatprep.subr.mxu0 0.0
          %976 = vmatpush1.msra.mxu0 0.0
          %977 = vmatprep.subr.mxu0 0.0
          %978 = vmatpush1.msra.mxu0 0.0
          %979 = vmatprep.subr.mxu0 0.0
          %980 = vmatpush1.msra.mxu0 0.0
          %981 = vmatprep.subr.mxu0 0.0
          %982 = vmatpush1.msra.mxu0 0.0
          %983 = vmatprep.subr.mxu0 0.0
          %984 = vmatpush1.msra.mxu0 0.0
          %985 = vmatprep.subr.mxu0 0.0
          %986 = vmatpush1.msra.mxu0 0.0
          %987 = vmatprep.subr.mxu0 0.0
          %988 = vmatpush1.msra.mxu0 0.0
          %989 = vmatprep.subr.mxu0 0.0
          %990 = vmatpush1.msra.mxu0 0.0
          %991 = vmatprep.subr.mxu0 0.0
          %992 = vmatpush1.msra.mxu0 0.0
          %993 = vmatprep.subr.mxu0 0.0
          %994 = vmatpush1.msra.mxu0 0.0
          %995 = vmatprep.subr.mxu0 0.0
          %996 = vmatpush1.msra.mxu0 0.0
          %997 = vmatprep.subr.mxu0 0.0
          %998 = vmatpush1.msra.mxu0 0.0
          %999 = vmatprep.mubr.f32.mxu0 0.0
          %1000 = vmatmul.mubr.f32.gmra.mrb[0].mxu0 %v888
          %v1001 = vpop.f32.mrb[0].mxu0
          %v1002 = vadd.f32 0.0, %v1001
          %v1003 = vpop.f32.mrb[0].mxu0
          %1004 = vmatprep.mubr.f32.mxu0 0.0
          %1005 = vmatmul.mubr.f32.gmra.mrb[0].mxu0 %v891
          %v1006 = vpop.f32.mrb[0].mxu0
          %v1007 = vadd.f32 0.0, %v1006
          %v1008 = vpop.f32.mrb[0].mxu0
          %1009 = vmatprep.mubr.f32.mxu0 0.0
          %1010 = vmatmul.mubr.f32.gmra.mrb[0].mxu0 %v894
          %v1011 = vpop.f32.mrb[0].mxu0
          %v1012 = vadd.f32 0.0, %v1011
          %v1013 = vpop.f32.mrb[0].mxu0
          %1014 = vmatprep.mubr.f32.mxu0 0.0
          %1015 = vmatmul.mubr.f32.gmra.mrb[0].mxu0 %v897
          %v1016 = vpop.f32.mrb[0].mxu0
          %v1017 = vadd.f32 0.0, %v1016
          %v1018 = vpop.f32.mrb[0].mxu0
          %1019 = vmatprep.mubr.f32.mxu0 0.0
          %1020 = vmatmul.mubr.f32.gmra.mrb[0].mxu0 %v900
          %v1021 = vpop.f32.mrb[0].mxu0
          %v1022 = vadd.f32 0.0, %v1021
          %v1023 = vpop.f32.mrb[0].mxu0
          %1024 = vmatprep.mubr.f32.mxu0 0.0
          %1025 = vmatmul.mubr.f32.gmra.mrb[0].mxu0 %v903
          %v1026 = vpop.f32.mrb[0].mxu0
          %v1027 = vadd.f32 0.0, %v1026
          %v1028 = vpop.f32.mrb[0].mxu0
          %1029 = vmatprep.mubr.f32.mxu0 0.0
          %1030 = vmatmul.mubr.f32.gmra.mrb[0].mxu0 %v906
          %v1031 = vpop.f32.mrb[0].mxu0
          %v1032 = vadd.f32 0.0, %v1031
          %v1033 = vpop.f32.mrb[0].mxu0
          %1034 = vmatprep.mubr.f32.mxu0 0.0
          %1035 = vmatmul.mubr.f32.gmra.mrb[0].mxu0 %v909
          %v1036 = vpop.f32.mrb[0].mxu0
          %v1037 = vadd.f32 0.0, %v1036
          %v1038 = vpop.f32.mrb[0].mxu0
          %1039 = vmatprep.mubr.f32.mxu0 0.0
          %1040 = vmatmul.mubr.f32.gmra.mrb[0].mxu0 %v912
          %v1041 = vpop.f32.mrb[0].mxu0
          %v1042 = vadd.f32 0.0, %v1041
          %v1043 = vpop.f32.mrb[0].mxu0
          %1044 = vmatprep.mubr.f32.mxu0 0.0
          %1045 = vmatmul.mubr.f32.gmra.mrb[0].mxu0 %v915
          %v1046 = vpop.f32.mrb[0].mxu0
          %v1047 = vadd.f32 0.0, %v1046
          %v1048 = vpop.f32.mrb[0].mxu0
          %1049 = vmatprep.mubr.f32.mxu0 0.0
          %1050 = vmatmul.mubr.f32.gmra.mrb[0].mxu0 %v918
          %v1051 = vpop.f32.mrb[0].mxu0
          %v1052 = vadd.f32 0.0, %v1051
          %v1053 = vpop.f32.mrb[0].mxu0
          %1054 = vmatprep.mubr.f32.mxu0 0.0
          %1055 = vmatmul.mubr.f32.gmra.mrb[0].mxu0 %v921
          %v1056 = vpop.f32.mrb[0].mxu0
          %v1057 = vadd.f32 0.0, %v1056
          %v1058 = vpop.f32.mrb[0].mxu0
          %1059 = vmatprep.mubr.f32.mxu0 0.0
          %1060 = vmatmul.mubr.f32.gmra.mrb[0].mxu0 %v924
          %v1061 = vpop.f32.mrb[0].mxu0
          %v1062 = vadd.f32 0.0, %v1061
          %v1063 = vpop.f32.mrb[0].mxu0
          %1064 = vmatprep.mubr.f32.mxu0 0.0
          %1065 = vmatmul.mubr.f32.gmra.mrb[0].mxu0 %v927
          %v1066 = vpop.f32.mrb[0].mxu0
          %v1067 = vadd.f32 0.0, %v1066
          %v1068 = vpop.f32.mrb[0].mxu0
          %1069 = vmatprep.mubr.f32.mxu0 0.0
          %1070 = vmatmul.mubr.f32.gmra.mrb[0].mxu0 %v930
          %v1071 = vpop.f32.mrb[0].mxu0
          %v1072 = vadd.f32 0.0, %v1071
          %v1073 = vpop.f32.mrb[0].mxu0
          %1074 = vmatprep.mubr.f32.mxu0 0.0
          %1075 = vmatmul.mubr.f32.gmra.mrb[0].mxu0 %v933
          %v1076 = vpop.f32.mrb[0].mxu0
          %v1077 = vadd.f32 0.0, %v1076
          %v1078 = vpop.f32.mrb[0].mxu0
          %1079 = vdwg.mxu0
          %v1081 = vsel %vm886, %v842, 0
          %v1084 = vsel %vm886, %v843, 0
          %v1087 = vsel %vm886, %v844, 0
          %v1090 = vsel %vm886, %v845, 0
          %v1093 = vsel %vm886, %v846, 0
          %v1096 = vsel %vm886, %v847, 0
          %v1099 = vsel %vm886, %v848, 0
          %v1102 = vsel %vm886, %v849, 0
          %v1105 = vsel %vm886, %v850, 0
          %v1108 = vsel %vm886, %v851, 0
          %v1111 = vsel %vm886, %v852, 0
          %v1114 = vsel %vm886, %v853, 0
          %v1117 = vsel %vm886, %v854, 0
          %v1120 = vsel %vm886, %v855, 0
          %v1123 = vsel %vm886, %v856, 0
          %v1126 = vsel %vm886, %v857, 0
          %1128 = vmatprep.subr.mxu0 0.0
          %1129 = vmatpush1.msra.mxu0 %v858
          %1130 = vmatprep.subr.mxu0 0.0
          %1131 = vmatpush1.msra.mxu0 %v859
          %1132 = vmatprep.subr.mxu0 0.0
          %1133 = vmatpush1.msra.mxu0 %v860
          %1134 = vmatprep.subr.mxu0 0.0
          %1135 = vmatpush1.msra.mxu0 %v861
          %1136 = vmatprep.subr.mxu0 0.0
          %1137 = vmatpush1.msra.mxu0 %v862
          %1138 = vmatprep.subr.mxu0 0.0
          %1139 = vmatpush1.msra.mxu0 %v863
          %1140 = vmatprep.subr.mxu0 0.0
          %1141 = vmatpush1.msra.mxu0 0.0
          %1142 = vmatprep.subr.mxu0 0.0
          %1143 = vmatpush1.msra.mxu0 0.0
          %1144 = vmatprep.subr.mxu0 0.0
          %1145 = vmatpush1.msra.mxu0 0.0
          %1146 = vmatprep.subr.mxu0 0.0
          %1147 = vmatpush1.msra.mxu0 0.0
          %1148 = vmatprep.subr.mxu0 0.0
          %1149 = vmatpush1.msra.mxu0 0.0
          %1150 = vmatprep.subr.mxu0 0.0
          %1151 = vmatpush1.msra.mxu0 0.0
          %1152 = vmatprep.subr.mxu0 0.0
          %1153 = vmatpush1.msra.mxu0 0.0
          %1154 = vmatprep.subr.mxu0 0.0
          %1155 = vmatpush1.msra.mxu0 0.0
          %1156 = vmatprep.subr.mxu0 0.0
          %1157 = vmatpush1.msra.mxu0 0.0
          %1158 = vmatprep.subr.mxu0 0.0
          %1159 = vmatpush1.msra.mxu0 0.0
          %1160 = vmatprep.subr.mxu0 0.0
          %1161 = vmatpush1.msra.mxu0 0.0
          %1162 = vmatprep.subr.mxu0 0.0
          %1163 = vmatpush1.msra.mxu0 0.0
          %1164 = vmatprep.subr.mxu0 0.0
          %1165 = vmatpush1.msra.mxu0 0.0
          %1166 = vmatprep.subr.mxu0 0.0
          %1167 = vmatpush1.msra.mxu0 0.0
          %1168 = vmatprep.subr.mxu0 0.0
          %1169 = vmatpush1.msra.mxu0 0.0
          %1170 = vmatprep.subr.mxu0 0.0
          %1171 = vmatpush1.msra.mxu0 0.0
          %1172 = vmatprep.subr.mxu0 0.0
          %1173 = vmatpush1.msra.mxu0 0.0
          %1174 = vmatprep.subr.mxu0 0.0
          %1175 = vmatpush1.msra.mxu0 0.0
          %1176 = vmatprep.subr.mxu0 0.0
          %1177 = vmatpush1.msra.mxu0 0.0
          %1178 = vmatprep.subr.mxu0 0.0
          %1179 = vmatpush1.msra.mxu0 0.0
          %1180 = vmatprep.subr.mxu0 0.0
          %1181 = vmatpush1.msra.mxu0 0.0
          %1182 = vmatprep.subr.mxu0 0.0
          %1183 = vmatpush1.msra.mxu0 0.0
          %1184 = vmatprep.subr.mxu0 0.0
          %1185 = vmatpush1.msra.mxu0 0.0
          %1186 = vmatprep.subr.mxu0 0.0
          %1187 = vmatpush1.msra.mxu0 0.0
          %1188 = vmatprep.subr.mxu0 0.0
          %1189 = vmatpush1.msra.mxu0 0.0
          %1190 = vmatprep.subr.mxu0 0.0
          %1191 = vmatpush1.msra.mxu0 0.0
          %1192 = vmatprep.mubr.f32.mxu0 0.0
          %1193 = vmatmul.mubr.f32.gmra.mrb[0].mxu0 %v1081
          %v1194 = vpop.f32.mrb[0].mxu0
          %v1195 = vadd.f32 %v1002, %v1194
          %v1196 = vpop.f32.mrb[0].mxu0
          %1197 = vmatprep.mubr.f32.mxu0 0.0
          %1198 = vmatmul.mubr.f32.gmra.mrb[0].mxu0 %v1084
          %v1199 = vpop.f32.mrb[0].mxu0
          %v1200 = vadd.f32 %v1007, %v1199
          %v1201 = vpop.f32.mrb[0].mxu0
          %1202 = vmatprep.mubr.f32.mxu0 0.0
          %1203 = vmatmul.mubr.f32.gmra.mrb[0].mxu0 %v1087
          %v1204 = vpop.f32.mrb[0].mxu0
          %v1205 = vadd.f32 %v1012, %v1204
          %v1206 = vpop.f32.mrb[0].mxu0
          %1207 = vmatprep.mubr.f32.mxu0 0.0
          %1208 = vmatmul.mubr.f32.gmra.mrb[0].mxu0 %v1090
          %v1209 = vpop.f32.mrb[0].mxu0
          %v1210 = vadd.f32 %v1017, %v1209
          %v1211 = vpop.f32.mrb[0].mxu0
          %1212 = vmatprep.mubr.f32.mxu0 0.0
          %1213 = vmatmul.mubr.f32.gmra.mrb[0].mxu0 %v1093
          %v1214 = vpop.f32.mrb[0].mxu0
          %v1215 = vadd.f32 %v1022, %v1214
          %v1216 = vpop.f32.mrb[0].mxu0
          %1217 = vmatprep.mubr.f32.mxu0 0.0
          %1218 = vmatmul.mubr.f32.gmra.mrb[0].mxu0 %v1096
          %v1219 = vpop.f32.mrb[0].mxu0
          %v1220 = vadd.f32 %v1027, %v1219
          %v1221 = vpop.f32.mrb[0].mxu0
          %1222 = vmatprep.mubr.f32.mxu0 0.0
          %1223 = vmatmul.mubr.f32.gmra.mrb[0].mxu0 %v1099
          %v1224 = vpop.f32.mrb[0].mxu0
          %v1225 = vadd.f32 %v1032, %v1224
          %v1226 = vpop.f32.mrb[0].mxu0
          %1227 = vmatprep.mubr.f32.mxu0 0.0
          %1228 = vmatmul.mubr.f32.gmra.mrb[0].mxu0 %v1102
          %v1229 = vpop.f32.mrb[0].mxu0
          %v1230 = vadd.f32 %v1037, %v1229
          %v1231 = vpop.f32.mrb[0].mxu0
          %1232 = vmatprep.mubr.f32.mxu0 0.0
          %1233 = vmatmul.mubr.f32.gmra.mrb[0].mxu0 %v1105
          %v1234 = vpop.f32.mrb[0].mxu0
          %v1235 = vadd.f32 %v1042, %v1234
          %v1236 = vpop.f32.mrb[0].mxu0
          %1237 = vmatprep.mubr.f32.mxu0 0.0
          %1238 = vmatmul.mubr.f32.gmra.mrb[0].mxu0 %v1108
          %v1239 = vpop.f32.mrb[0].mxu0
          %v1240 = vadd.f32 %v1047, %v1239
          %v1241 = vpop.f32.mrb[0].mxu0
          %1242 = vmatprep.mubr.f32.mxu0 0.0
          %1243 = vmatmul.mubr.f32.gmra.mrb[0].mxu0 %v1111
          %v1244 = vpop.f32.mrb[0].mxu0
          %v1245 = vadd.f32 %v1052, %v1244
          %v1246 = vpop.f32.mrb[0].mxu0
          %1247 = vmatprep.mubr.f32.mxu0 0.0
          %1248 = vmatmul.mubr.f32.gmra.mrb[0].mxu0 %v1114
          %v1249 = vpop.f32.mrb[0].mxu0
          %v1250 = vadd.f32 %v1057, %v1249
          %v1251 = vpop.f32.mrb[0].mxu0
          %1252 = vmatprep.mubr.f32.mxu0 0.0
          %1253 = vmatmul.mubr.f32.gmra.mrb[0].mxu0 %v1117
          %v1254 = vpop.f32.mrb[0].mxu0
          %v1255 = vadd.f32 %v1062, %v1254
          %v1256 = vpop.f32.mrb[0].mxu0
          %1257 = vmatprep.mubr.f32.mxu0 0.0
          %1258 = vmatmul.mubr.f32.gmra.mrb[0].mxu0 %v1120
          %v1259 = vpop.f32.mrb[0].mxu0
          %v1260 = vadd.f32 %v1067, %v1259
          %v1261 = vpop.f32.mrb[0].mxu0
          %1262 = vmatprep.mubr.f32.mxu0 0.0
          %1263 = vmatmul.mubr.f32.gmra.mrb[0].mxu0 %v1123
          %v1264 = vpop.f32.mrb[0].mxu0
          %v1265 = vadd.f32 %v1072, %v1264
          %v1266 = vpop.f32.mrb[0].mxu0
          %1267 = vmatprep.mubr.f32.mxu0 0.0
          %1268 = vmatmul.mubr.f32.gmra.mrb[0].mxu0 %v1126
          %v1269 = vpop.f32.mrb[0].mxu0
          %v1270 = vadd.f32 %v1077, %v1269
          %v1271 = vpop.f32.mrb[0].mxu0
          %1272 = vdwg.mxu0
          %v1273 = vld [vmem:[%s5] sm:$0x1]
          %v1275 = vlaneseq
          %v1276 = vshrl.u32 %v1275, 7
          %v1277 = vsub.s32 0, %v1276
          %v1278 = vrot.slane %v1273, %v1277
          %v1280 = vadd.f32 %v1195, %v1278
          %v1281 = vadd.f32 %v1200, %v1278
          %v1282 = vadd.f32 %v1205, %v1278
          %v1283 = vadd.f32 %v1210, %v1278
          %v1284 = vadd.f32 %v1215, %v1278
          %v1285 = vadd.f32 %v1220, %v1278
          %v1286 = vadd.f32 %v1225, %v1278
          %v1287 = vadd.f32 %v1230, %v1278
          %v1288 = vadd.f32 %v1235, %v1278
          %v1289 = vadd.f32 %v1240, %v1278
          %v1290 = vadd.f32 %v1245, %v1278
          %v1291 = vadd.f32 %v1250, %v1278
          %v1292 = vadd.f32 %v1255, %v1278
          %v1293 = vadd.f32 %v1260, %v1278
          %v1294 = vadd.f32 %v1265, %v1278
          %v1295 = vadd.f32 %v1270, %v1278
          %v1296 = vmax.f32 %v1280, 0.0
          %v1297 = vmax.f32 %v1281, 0.0
          %v1298 = vmax.f32 %v1282, 0.0
          %v1299 = vmax.f32 %v1283, 0.0
          %v1300 = vmax.f32 %v1284, 0.0
          %v1301 = vmax.f32 %v1285, 0.0
          %v1302 = vmax.f32 %v1286, 0.0
          %v1303 = vmax.f32 %v1287, 0.0
          %v1304 = vmax.f32 %v1288, 0.0
          %v1305 = vmax.f32 %v1289, 0.0
          %v1306 = vmax.f32 %v1290, 0.0
          %v1307 = vmax.f32 %v1291, 0.0
          %v1308 = vmax.f32 %v1292, 0.0
          %v1309 = vmax.f32 %v1293, 0.0
          %v1310 = vmax.f32 %v1294, 0.0
          %v1311 = vmax.f32 %v1295, 0.0
          %1312 = vst [vmem:[%s399] sm:$0xff] %v1296
          %1313 = vst [vmem:[%s399 + $0x8] sm:$0xff] %v1297
          %1314 = vst [vmem:[%s399 + $0x10] sm:$0xff] %v1298
          %1315 = vst [vmem:[%s399 + $0x18] sm:$0xff] %v1299
          %1316 = vst [vmem:[%s399 + $0x20] sm:$0xff] %v1300
          %1317 = vst [vmem:[%s399 + $0x28] sm:$0xff] %v1301
          %1318 = vst [vmem:[%s399 + $0x30] sm:$0xff] %v1302
          %1319 = vst [vmem:[%s399 + $0x38] sm:$0xff] %v1303
          %1320 = vst [vmem:[%s399 + $0x40] sm:$0xff] %v1304
          %1321 = vst [vmem:[%s399 + $0x48] sm:$0xff] %v1305
          %1322 = vst [vmem:[%s399 + $0x50] sm:$0xff] %v1306
          %1323 = vst [vmem:[%s399 + $0x58] sm:$0xff] %v1307
          %1324 = vst [vmem:[%s399 + $0x60] sm:$0xff] %v1308
          %1325 = vst [vmem:[%s399 + $0x68] sm:$0xff] %v1309
          %1326 = vst [vmem:[%s399 + $0x70] sm:$0xff] %v1310
          %1327 = vst [vmem:[%s399 + $0x78] sm:$0xff] %v1311
        $region93: #{tpu_custom_call.1} parent=80 // pred_fallthru
          _
        %s1328 = sand.u32 %s183, 1
        %s1329 = scalar_lea.sflag [#allocation5], %s1328
        %s1330 = sand.u32 %s183, 1
        %s1331 = smul.addr %s1330, 128
        %s1332 = scalar_lea.vmem [#allocation4], %s1331
        // Predicated region
        $region94: #{tpu_custom_call.1} parent=80 // pred_check
          %p1333 = pneg %p193
        $region95: #{tpu_custom_call.1} parent=80 // pred_check_branch
          %1335 = sbr.rel (%p1333) target = $region97
        $region96: #{tpu_custom_call.1} parent=80 // pred_region
          %s1336 = smul.u32 16, %s24
          %s1338 = ssub.s32 2048, 2048
          %1339 = vsyncadd %s1329, %s1338
          %s1340 = smul.addr %s1336, 128
          %s1341 = scalar_lea.hbm %s6, %s1340
          %s1342 = sshll.u32 %s1332, 4
          %s1343 = int_to_ptr.vmem [resolvable:$true] %s1342
          %1348 = dma.vmem_to_hbm [thread:$0]  %s1343, 2048, %s1341, %s1329, 128, 128, 8
        $region97: #{tpu_custom_call.1} parent=80 // pred_fallthru
          _
      $region81: #{tpu_custom_call.1} parent=5 // pred_fallthru
        _
      %p1349 = scmp.le.s32.totalorder 2, %s15
      // Predicated region
      $region98: #{tpu_custom_call.1} parent=5 // pred_check
        %p1350 = pneg %p1349
      $region99: #{tpu_custom_call.1} parent=5 // pred_check_branch
        %1352 = sbr.rel (%p1350) target = $region101
      $region100: #{tpu_custom_call.1} parent=5 // pred_region
        %s1353 = ssub.s32 %s15, 2
        // Predicated region
        $region102: #{tpu_custom_call.1} parent=100 // pred_check
          %p1354 = pneg %p199
        $region103: #{tpu_custom_call.1} parent=100 // pred_check_branch
          %1356 = sbr.rel (%p1354) target = $region105
        $region104: #{tpu_custom_call.1} parent=100 // pred_region
          %s1357 = sand.u32 %s184, 1
          %s1358 = scalar_lea.sflag [#allocation5], %s1357
          %s1359 = sand.u32 %s184, 1
          %s1360 = smul.addr %s1359, 128
          %s1361 = scalar_lea.vmem [#allocation4], %s1360
          %1362 = dma.done %s1358, 2048
        $region105: #{tpu_custom_call.1} parent=100 // pred_fallthru
          _
      $region101: #{tpu_custom_call.1} parent=5 // pred_fallthru
        _
    $region6: #{tpu_custom_call.1} parent=1 // loop_footer
      %s19 = sadd.s32 1, %s15
    $region7: #{tpu_custom_call.1} parent=1 // loop_footer_branch
      %14 = sbr.rel target = $region3
    $region8: #{tpu_custom_call.1} parent=1 // loop_exit
      _
    %1363 = vsyncpa [#allocation5], 1
    %s1364 = scalar_lea.sflag [#allocation5], 1
    %1365 = vsyncpa %s1364, 1

</llo_original>
